<compile_context>
chip_gen: v7x
topology: tpu7x:2x2x1
jax: 0.10.0
libtpu: 0.0.40
codegen_flags: <defaults>
</compile_context>

<pallas_src>
import functools

import jax
import jax.numpy as jnp
from jax.experimental import pallas as pl
from jax.experimental.pallas import tpu as pltpu

_LANES = 128
_SUBLANES = 8
_BLOCK_BYTES = 4 * 1024 * 1024      # target (input + output) bytes per grid block


def _round_up(x, m):
    return ((x + m - 1) // m) * m


def _bernoulli_ste_kernel(seed_ref, theta_ref, out_ref, *, use_hw_prng):
    """Training forward on one (tile_r, 128) tile: sample ~ Bernoulli(theta)."""
    if use_hw_prng:
        # Hardware PRNG: per-tile stream keyed on (seed, grid step), so every tile
        # (and every TensorCore under "parallel") draws independent bits.
        pltpu.prng_seed(seed_ref[0], pl.program_id(0))
        bits = pltpu.bitcast(pltpu.prng_random_bits(theta_ref.shape), jnp.uint32)
    else:
        # Portable fallback (interpret / non-TPU backends): one murmur3 finalizer
        # round over a counter = global element index, pid offset kept scalar so
        # the in-tile iota is loop-invariant.
        tile_r, lanes = theta_ref.shape
        base = pl.program_id(0) * (tile_r * lanes)
        row = jax.lax.broadcasted_iota(jnp.int32, (tile_r, lanes), 0)
        col = jax.lax.broadcasted_iota(jnp.int32, (tile_r, lanes), 1)
        idx = base + row * lanes + col
        seed_u = seed_ref[0].astype(jnp.uint32)
        h = idx.astype(jnp.uint32) ^ (seed_u * jnp.uint32(0x9E3779B9))
        h = h * jnp.uint32(0x85EBCA6B)
        h = h ^ jax.lax.shift_right_logical(h, jnp.uint32(13))
        h = h * jnp.uint32(0xC2B2AE35)
        h = h ^ jax.lax.shift_right_logical(h, jnp.uint32(16))
        bits = h

    # Top 24 bits -> uniform float32 in [0, 1) (exact int -> float conversion).
    bits24 = jax.lax.shift_right_logical(bits, jnp.uint32(8)).astype(jnp.int32)
    u = bits24.astype(jnp.float32) * jnp.float32(1.0 / (1 << 24))

    theta = theta_ref[...].astype(jnp.float32)
    # Compare + select (2 VPU ops) instead of (sign(theta - u) + 1) / 2 (~5 ops).
    # Ties (theta == u, prob ~2^-24) resolve to 0/1 instead of the reference's 0.5.
    out_ref[...] = jnp.where(theta > u, jnp.float32(1.0),
                             jnp.float32(0.0)).astype(out_ref.dtype)


@functools.partial(jax.jit, static_argnames=("training", "use_hw_prng"))
def _bernoulli_ste_forward_impl(theta, seed, training, use_hw_prng):
    if not training:
        # Eval path: a single fused XLA compare is already HBM-roofline bound;
        # a Pallas kernel here would only add launch overhead.
        return theta > 0.5

    orig_shape = theta.shape
    if not jnp.issubdtype(theta.dtype, jnp.floating):
        theta = theta.astype(jnp.float32)
    io_dtype = theta.dtype            # native-dtype I/O (bf16 stays bf16)

    flat = theta.reshape(-1)
    n = flat.shape[0]

    # Pad only when the element count is not lane-aligned; aligned shapes get a
    # free reshape (ragged shapes pay one extra HBM pass for the pad + slice).
    n_lane = _round_up(n, _LANES)
    if n_lane != n:
        flat = jnp.pad(flat, (0, n_lane - n))
    rows = n_lane // _LANES
    slab = flat.reshape(rows, _LANES)

    # Tile rows so that (input + output) bytes per block ~= 4 MiB  ->  ~8 MiB
    # double-buffered working set: fits v5e's 16 MiB scoped-VMEM default and is
    # well under v7x's 64 MiB physical VMEM.
    bytes_per_row = _LANES * 2 * jnp.dtype(io_dtype).itemsize
    tile_cap = max(_SUBLANES, (_BLOCK_BYTES // bytes_per_row) // _SUBLANES * _SUBLANES)

    if rows < _SUBLANES:
        tile_r = rows                                   # block == full array dim
    elif rows <= tile_cap:
        # Split mid-size tensors into >= 2 blocks so both v7x TensorCores get work.
        tile_r = _round_up(pl.cdiv(rows, 2), _SUBLANES)
    else:
        tile_r = tile_cap
    grid = (pl.cdiv(rows, tile_r),)

    seed_arr = jnp.asarray(seed, jnp.int32).reshape(1)
    kernel = functools.partial(_bernoulli_ste_kernel, use_hw_prng=use_hw_prng)

    out_slab = pl.pallas_call(
        kernel,
        out_shape=jax.ShapeDtypeStruct((rows, _LANES), io_dtype),
        grid=grid,
        in_specs=[
            pl.BlockSpec(memory_space=pltpu.SMEM),              # seed scalar
            pl.BlockSpec((tile_r, _LANES), lambda i: (i, 0)),   # theta tile
        ],
        out_specs=pl.BlockSpec((tile_r, _LANES), lambda i: (i, 0)),
        compiler_params=pltpu.CompilerParams(
            dimension_semantics=("parallel",),                  # megacore sharding
            vmem_limit_bytes=32 * 1024 * 1024),
    )(seed_arr, slab)

    out_flat = out_slab.reshape(-1)
    if n_lane != n:
        out_flat = out_flat[:n]
    return out_flat.reshape(orig_shape)


def bernoulli_ste_forward(theta, seed, training=True):
    """Pallas implementation of BernoulliSTEOp.forward.

    Args:
      theta: float tensor (any shape; success probabilities in [0, 1]).
      seed:  int scalar seed for the per-tile PRNG stream.
      training: if True, draw a Bernoulli sample (STE forward); else threshold.

    Returns:
      sample in theta.dtype (training) or bool mask (eval), same shape as theta.
    """
    use_hw_prng = jax.default_backend() == "tpu"
    return _bernoulli_ste_forward_impl(theta, seed, training=training,
                                       use_hw_prng=use_hw_prng)


class BernoulliSTEOp:
    """JAX/Pallas mirror of the PyTorch BernoulliSTEOp module (forward only)."""

    # TODO(synk): the straight-through backward (identity gradient) is not
    # implemented; wrap bernoulli_ste_forward in jax.custom_vjp if grads are needed.

    def __init__(self, shape):
        self.shape = tuple(shape)     # distribution (rv) shape
        self.ndim = len(self.shape)
        self.training = True

    def train(self):
        self.training = True
        return self

    def eval(self):
        self.training = False
        return self

    def __call__(self, theta, seed=0):
        # theta.ndim == dist.ndim -> single sample / threshold.
        # theta.ndim  > dist.ndim -> PyTorch stacks per-slice results; the op is
        # elementwise with i.i.d. uniforms, so one fused kernel over the stacked
        # tensor is semantically equivalent.
        return bernoulli_ste_forward(theta, seed, training=self.training)


if __name__ == "__main__":
    key = jax.random.PRNGKey(0)
    dist_shape = (4, 16, 16)                  # BernoulliRV shape
    batch = 2
    theta = jax.random.uniform(key, (batch,) + dist_shape, dtype=jnp.float32)

    op = BernoulliSTEOp(dist_shape)

    # Training-mode forward (Bernoulli sample via STE forward).
    op.train()
    sample = jax.block_until_ready(op(theta, seed=42))
    assert sample.shape == theta.shape and sample.dtype == theta.dtype
    vals = jnp.unique(sample)
    assert bool(jnp.all((vals == 0.0) | (vals == 1.0)))
    # Empirical sample mean should track mean(theta) (loose, ~9-sigma bound).
    assert abs(float(sample.mean()) - float(theta.mean())) < 0.1

    # Eval-mode forward (hard threshold -> bool), check against reference.
    op.eval()
    mask = jax.block_until_ready(op(theta))
    assert mask.shape == theta.shape and mask.dtype == jnp.bool_
    assert bool(jnp.array_equal(mask, theta > 0.5))

    print("KERNEL_OK")
</pallas_src>

<mosaic_0001>
module attributes {stable_mosaic.version = 11 : i64} {
  func.func @_bernoulli_ste_kernel(%arg0: i32, %arg1: memref<1xi32, #tpu.memory_space<smem>>, %arg2: memref<8x128xf32, #tpu.memory_space<vmem>>, %arg3: memref<8x128xf32, #tpu.memory_space<vmem>>) attributes {dimension_semantics = [#tpu.dimension_semantics<parallel>], iteration_bounds = array<i64: 2>, scalar_prefetch = 0 : i64, scratch_operands = 0 : i64, tpu.core_type = #tpu.core_type<tc>, window_params = [{transform_indices = @transform_0, window_bounds = array<i64: 1>}, {transform_indices = @transform_1, window_bounds = array<i64: 8, 128>}, {transform_indices = @transform_2, window_bounds = array<i64: 8, 128>}]} {
    %c1024_i32 = arith.constant 1024 : i32
    %0 = arith.muli %arg0, %c1024_i32 : i32
    %1 = tpu.iota {dimensions = array<i32: 0>} : vector<8x128xi32>
    %2 = tpu.iota {dimensions = array<i32: 1>} : vector<8x128xi32>
    %c128_i32 = arith.constant 128 : i32
    %3 = vector.broadcast %c128_i32 : i32 to vector<8x128xi32>
    %4 = arith.muli %1, %3 : vector<8x128xi32>
    %5 = vector.broadcast %0 : i32 to vector<8x128xi32>
    %6 = arith.addi %5, %4 : vector<8x128xi32>
    %7 = arith.addi %6, %2 : vector<8x128xi32>
    %c0 = arith.constant 0 : index
    %8 = memref.load %arg1[%c0] : memref<1xi32, #tpu.memory_space<smem>>
    %c-1640531527_i32 = arith.constant -1640531527 : i32
    %9 = arith.muli %8, %c-1640531527_i32 : i32
    %10 = vector.broadcast %9 : i32 to vector<8x128xi32>
    %11 = arith.xori %7, %10 : vector<8x128xi32>
    %c-2048144789_i32 = arith.constant -2048144789 : i32
    %12 = vector.broadcast %c-2048144789_i32 : i32 to vector<8x128xi32>
    %13 = arith.muli %11, %12 : vector<8x128xi32>
    %c13_i32 = arith.constant 13 : i32
    %14 = vector.broadcast %c13_i32 : i32 to vector<8x128xi32>
    %15 = arith.shrui %13, %14 : vector<8x128xi32>
    %16 = arith.xori %13, %15 : vector<8x128xi32>
    %c-1028477387_i32 = arith.constant -1028477387 : i32
    %17 = vector.broadcast %c-1028477387_i32 : i32 to vector<8x128xi32>
    %18 = arith.muli %16, %17 : vector<8x128xi32>
    %c16_i32 = arith.constant 16 : i32
    %19 = vector.broadcast %c16_i32 : i32 to vector<8x128xi32>
    %20 = arith.shrui %18, %19 : vector<8x128xi32>
    %21 = arith.xori %18, %20 : vector<8x128xi32>
    %c8_i32 = arith.constant 8 : i32
    %22 = vector.broadcast %c8_i32 : i32 to vector<8x128xi32>
    %23 = arith.shrui %21, %22 : vector<8x128xi32>
    %24 = arith.sitofp %23 : vector<8x128xi32> to vector<8x128xf32>
    %cst = arith.constant 5.96046448E-8 : f32
    %25 = vector.broadcast %cst : f32 to vector<8x128xf32>
    %26 = arith.mulf %24, %25 : vector<8x128xf32>
    %c0_0 = arith.constant 0 : index
    %c0_1 = arith.constant 0 : index
    %27 = vector.load %arg2[%c0_0, %c0_1] : memref<8x128xf32, #tpu.memory_space<vmem>>, vector<8x128xf32>
    %28 = arith.cmpf ogt, %27, %26 : vector<8x128xf32>
    %cst_2 = arith.constant 1.000000e+00 : f32
    %cst_3 = arith.constant 0.000000e+00 : f32
    %29 = vector.broadcast %cst_2 : f32 to vector<8x128xf32>
    %30 = vector.broadcast %cst_3 : f32 to vector<8x128xf32>
    %31 = arith.select %28, %29, %30 : vector<8x128xi1>, vector<8x128xf32>
    %c0_4 = arith.constant 0 : index
    %c0_5 = arith.constant 0 : index
    %32 = vector.load %arg3[%c0_4, %c0_5] : memref<8x128xf32, #tpu.memory_space<vmem>>, vector<8x128xf32>
    tpu.vector_store %arg3[%c0_4, %c0_5], %31 {strides = array<i32>} : memref<8x128xf32, #tpu.memory_space<vmem>>, vector<8x128xf32>,
    return
  }
  func.func @transform_0(%arg0: i32) -> i32 {
    %c0_i32 = arith.constant 0 : i32
    %c0_i32_0 = arith.constant 0 : i32
    return %c0_i32 : i32
  }
  func.func @transform_1(%arg0: i32) -> (i32, i32) {
    %c0_i32 = arith.constant 0 : i32
    %c0_i32_0 = arith.constant 0 : i32
    return %arg0, %c0_i32 : i32, i32
  }
  func.func @transform_2(%arg0: i32) -> (i32, i32) {
    %c0_i32 = arith.constant 0 : i32
    %c0_i32_0 = arith.constant 0 : i32
    return %arg0, %c0_i32 : i32, i32
  }
}

</mosaic_0001>

<llo_original>
// kernel: _bernoulli_ste_forward_impl.1
$region0: #{_bernoulli_ste_forward_impl.1}
  #allocation0 [shape = 'u32[]', space=smem, size = 0x4, offset = 0x4, fixed_abs, tag = 'smem constant byte address 0x4 - core index']
  #allocation1 [shape = 'u32[144,128]{1,0:T(1,128)}', space=vmem, size = 0x12000, scoped, tag = 'internal scratch']
  #allocation2 [shape = 's32[1]{0:T(128)S(6)}', space=smem, size = 0x200, scoped, tag = 'scoped memory for _bernoulli_ste_forward_impl.1']
  %s0 = inlined_call_operand.<no memory space> [shape: s32[1], index: 0, kind: input, shape index: {}]
  %s1 = inlined_call_operand.vmem [shape: f32[16,128], index: 1, kind: input, shape index: {}]
  %s2 = inlined_call_operand.vmem [shape: f32[16,128], index: 2, kind: output, shape index: {}]
  %s3 = sld [smem:[#allocation0]]
  $region41: #{_bernoulli_ste_forward_impl.1} parent=0
    _
  %s5 = ssub.s32 1, %s3
  %s6 = scalar_select 0, %s5, %s3
  %7 = sst [smem:[#allocation2]] %s0
  loop: start=0, step=1, limit=4
  $region2: #{_bernoulli_ste_forward_impl.1} parent=0 // loop_pre_header
    _
  $region3: #{_bernoulli_ste_forward_impl.1} parent=0 // loop_header
    %s9 = sphi 0, %s13
    %p10 = scmp.ge.s32.totalorder %s9, 4
    %s17 = sphi 0, %s17
    %s19 = sphi 0, %s17
    %s20 = sphi 0, %s19
    %s34 = sphi 0, %s20
    %s40 = sphi 0, %s42
    %s43 = sphi 0, %s40
    %s44 = sphi 0, %s43
    %s60 = sphi 0, %s44
    %s66 = sphi 0, %s68
    %s69 = sphi 0, %s66
    %s70 = sphi 0, %s69
    %s86 = sphi 0, %s70
  $region4: #{_bernoulli_ste_forward_impl.1} parent=0 // loop_header_branch
    %12 = sbr.rel (%p10) target = $region8
  $region5: #{_bernoulli_ste_forward_impl.1} parent=0 // loop_body
    %s14 = ssub.s32 %s9, 1
    %s15 = ssub.s32 %s9, 2
    %s16 = sadd.s32 %s9, 1
    %s18 = sadd.s32 %s17, 1
    %p21 = scmp.eq.s32.totalorder %s9, 1
    %p22 = scmp.ne.s32.totalorder %s17, %s19
    %p23 = scmp.eq.s32.totalorder %s9, 0
    %p24 = por %p22, %p23
    %p25 = scmp.ne.s32.totalorder %s17, %s19
    %p26 = scmp.eq.s32.totalorder %s14, 1
    %p27 = por %p25, %p26
    %p28 = scmp.ne.s32.totalorder %s19, %s20
    %p29 = scmp.eq.s32.totalorder %s14, 0
    %p30 = por %p28, %p29
    %p31 = scmp.ne.s32.totalorder %s19, %s20
    %p32 = scmp.eq.s32.totalorder %s15, 1
    %p33 = por %p31, %p32
    %p35 = scmp.ne.s32.totalorder %s20, %s34
    %p36 = scmp.eq.s32.totalorder %s15, 0
    %p37 = por %p35, %p36
    %s38 = ssub.s32 %s9, %s16
    %p39 = scmp.eq.s32.totalorder %s38, 0
    %s41 = sadd.s32 %s40, 1
    %s42 = scalar_select %p39, %s40, %s41
    %p45 = pneg %p39
    %p46 = scmp.eq.s32.totalorder %s9, 1
    %p47 = por %p45, %p46
    %p48 = scmp.ne.s32.totalorder %s40, %s43
    %p49 = scmp.eq.s32.totalorder %s9, 0
    %p50 = por %p48, %p49
    %p51 = scmp.ne.s32.totalorder %s40, %s43
    %p52 = scmp.eq.s32.totalorder %s14, 1
    %p53 = por %p51, %p52
    %p54 = scmp.ne.s32.totalorder %s43, %s44
    %p55 = scmp.eq.s32.totalorder %s14, 0
    %p56 = por %p54, %p55
    %p57 = scmp.ne.s32.totalorder %s43, %s44
    %p58 = scmp.eq.s32.totalorder %s15, 1
    %p59 = por %p57, %p58
    %p61 = scmp.ne.s32.totalorder %s44, %s60
    %p62 = scmp.eq.s32.totalorder %s15, 0
    %p63 = por %p61, %p62
    %s64 = ssub.s32 %s9, %s16
    %p65 = scmp.eq.s32.totalorder %s64, 0
    %s67 = sadd.s32 %s66, 1
    %s68 = scalar_select %p65, %s66, %s67
    %p71 = pneg %p65
    %p72 = scmp.eq.s32.totalorder %s9, 1
    %p73 = por %p71, %p72
    %p74 = scmp.ne.s32.totalorder %s66, %s69
    %p75 = scmp.eq.s32.totalorder %s9, 0
    %p76 = por %p74, %p75
    %p77 = scmp.ne.s32.totalorder %s66, %s69
    %p78 = scmp.eq.s32.totalorder %s14, 1
    %p79 = por %p77, %p78
    %p80 = scmp.ne.s32.totalorder %s69, %s70
    %p81 = scmp.eq.s32.totalorder %s14, 0
    %p82 = por %p80, %p81
    %p83 = scmp.ne.s32.totalorder %s69, %s70
    %p84 = scmp.eq.s32.totalorder %s15, 1
    %p85 = por %p83, %p84
    %p87 = scmp.ne.s32.totalorder %s70, %s86
    %p88 = scmp.eq.s32.totalorder %s15, 0
    %p89 = por %p87, %p88
    %p90 = scmp.le.s32.totalorder 1, %s9
    %p91 = scmp.lt.s32.totalorder %s9, 3
    %p92 = pnand %p90, %p91
    %p93 = pneg %p92
    // Predicated region
    $region9: #{_bernoulli_ste_forward_impl.1} parent=5 // pred_check
      _
    $region10: #{_bernoulli_ste_forward_impl.1} parent=5 // pred_check_branch
      %95 = sbr.rel (%p92) target = $region12
    $region11: #{_bernoulli_ste_forward_impl.1} parent=5 // pred_region
      %s96 = ssub.s32 %s9, 1
      // Predicated region
      $region13: #{_bernoulli_ste_forward_impl.1} parent=11 // pred_check
        %p97 = pneg %p30
      $region14: #{_bernoulli_ste_forward_impl.1} parent=11 // pred_check_branch
        %99 = sbr.rel (%p97) target = $region16
      $region15: #{_bernoulli_ste_forward_impl.1} parent=11 // pred_region
        _
      $region16: #{_bernoulli_ste_forward_impl.1} parent=11 // pred_fallthru
        _
    $region12: #{_bernoulli_ste_forward_impl.1} parent=5 // pred_fallthru
      _
    %p100 = scmp.lt.s32.totalorder %s9, 2
    // Predicated region
    $region17: #{_bernoulli_ste_forward_impl.1} parent=5 // pred_check
      %p101 = pneg %p100
    $region18: #{_bernoulli_ste_forward_impl.1} parent=5 // pred_check_branch
      %103 = sbr.rel (%p101) target = $region20
    $region19: #{_bernoulli_ste_forward_impl.1} parent=5 // pred_region
      // Predicated region
      $region21: #{_bernoulli_ste_forward_impl.1} parent=19 // pred_check
        %p104 = pneg %p50
      $region22: #{_bernoulli_ste_forward_impl.1} parent=19 // pred_check_branch
        %106 = sbr.rel (%p104) target = $region24
      $region23: #{_bernoulli_ste_forward_impl.1} parent=19 // pred_region
        %p107 = scmp.lt.s32.totalorder %s9, 1
        %s108 = scalar_select %p107, %s9, 1
        %s109 = smul.addr %s108, 8
        %s110 = scalar_lea.vmem %s1, %s109
      $region24: #{_bernoulli_ste_forward_impl.1} parent=19 // pred_fallthru
        _
    $region20: #{_bernoulli_ste_forward_impl.1} parent=5 // pred_fallthru
      _
    %p111 = scmp.le.s32.totalorder 1, %s9
    %p112 = scmp.lt.s32.totalorder %s9, 3
    %p113 = pnand %p111, %p112
    %p114 = pneg %p113
    // Predicated region
    $region25: #{_bernoulli_ste_forward_impl.1} parent=5 // pred_check
      _
    $region26: #{_bernoulli_ste_forward_impl.1} parent=5 // pred_check_branch
      %116 = sbr.rel (%p113) target = $region28
    $region27: #{_bernoulli_ste_forward_impl.1} parent=5 // pred_region
      %s117 = ssub.s32 %s9, 1
      %p118 = pneg %p30
      %p119 = pneg %p27
      %p120 = scmp.lt.s32.totalorder %s14, 1
      %s121 = scalar_select %p120, %s14, 1
      %s122 = smul.addr %s121, 8
      %s123 = scalar_lea.vmem %s1, %s122
      %p124 = pneg %p56
      %p125 = pneg %p53
      %p126 = pneg %p82
      %p127 = pneg %p79
      %p128 = scmp.lt.s32.totalorder %s14, 1
      %s129 = scalar_select %p128, %s14, 1
      %s130 = smul.addr %s129, 8
      %s131 = scalar_lea.vmem %s2, %s130
      %p132 = scmp.lt.s32.totalorder %s14, 1
      %s133 = scalar_select %p132, %s14, 1
      %s134 = smul.addr %s133, 8
      %s135 = scalar_lea.vmem %s1, %s134
      %p136 = scmp.lt.s32.totalorder %s14, 1
      %s137 = scalar_select %p136, %s14, 1
      %s138 = smul.addr %s137, 8
      %s139 = scalar_lea.vmem %s2, %s138
      %s140 = smul.u32 %s14, 1024
      %v141 = vlaneseq
      %v142 = vshrl.u32 %v141, 7
      %v143 = vlaneseq
      %v144 = vand.u32 %v143, 127
      %v145 = vmul.u32 %v142, 128
      %v146 = vstv %s140
      %v147 = vadd.s32 %v146, %v145
      %v148 = vadd.s32 %v147, %v144
      %s149 = sld [smem:[#allocation2]]
      %s150 = smul.u32 %s149, 2654435769
      %v151 = vstv %s150
      %v152 = vxor.u32 %v148, %v151
      %v153 = vmul.u32 %v152, 2246822507
      %v154 = vshrl.u32 %v153, 13
      %v155 = vxor.u32 %v153, %v154
      %v156 = vmul.u32 %v155, 3266489909
      %v157 = vshrl.u32 %v156, 16
      %v158 = vxor.u32 %v156, %v157
      %v159 = vshrl.u32 %v158, 8
      %v160 = vcvt.s32.f32 %v159
      %v161 = vmul.f32 %v160, 5.9604645e-08
      %v162 = vld [vmem:[%s135] sm:$0xff]
      %vm163 = vcmp.gt.f32.partialorder %v162, %v161
      %v164 = vsel %vm163, 1.0, 0.0
      %165 = vst [vmem:[%s139] sm:$0xff] %v164
      %p166 = scmp.lt.s32.totalorder %s14, 1
      %s167 = scalar_select %p166, %s14, 1
      %s168 = smul.addr %s167, 8
      %s169 = scalar_lea.vmem %s2, %s168
      // Predicated region
      $region29: #{_bernoulli_ste_forward_impl.1} parent=27 // pred_check
        %p170 = pneg %p79
      $region30: #{_bernoulli_ste_forward_impl.1} parent=27 // pred_check_branch
        %172 = sbr.rel (%p170) target = $region32
      $region31: #{_bernoulli_ste_forward_impl.1} parent=27 // pred_region
        _
      $region32: #{_bernoulli_ste_forward_impl.1} parent=27 // pred_fallthru
        _
    $region28: #{_bernoulli_ste_forward_impl.1} parent=5 // pred_fallthru
      _
    %p173 = scmp.le.s32.totalorder 2, %s9
    // Predicated region
    $region33: #{_bernoulli_ste_forward_impl.1} parent=5 // pred_check
      %p174 = pneg %p173
    $region34: #{_bernoulli_ste_forward_impl.1} parent=5 // pred_check_branch
      %176 = sbr.rel (%p174) target = $region36
    $region35: #{_bernoulli_ste_forward_impl.1} parent=5 // pred_region
      %s177 = ssub.s32 %s9, 2
      // Predicated region
      $region37: #{_bernoulli_ste_forward_impl.1} parent=35 // pred_check
        %p178 = pneg %p85
      $region38: #{_bernoulli_ste_forward_impl.1} parent=35 // pred_check_branch
        %180 = sbr.rel (%p178) target = $region40
      $region39: #{_bernoulli_ste_forward_impl.1} parent=35 // pred_region
        %p181 = scmp.lt.s32.totalorder %s15, 1
        %s182 = scalar_select %p181, %s15, 1
        %s183 = smul.addr %s182, 8
        %s184 = scalar_lea.vmem %s2, %s183
      $region40: #{_bernoulli_ste_forward_impl.1} parent=35 // pred_fallthru
        _
    $region36: #{_bernoulli_ste_forward_impl.1} parent=5 // pred_fallthru
      _
  $region6: #{_bernoulli_ste_forward_impl.1} parent=0 // loop_footer
    %s13 = sadd.s32 1, %s9
  $region7: #{_bernoulli_ste_forward_impl.1} parent=0 // loop_footer_branch
    %8 = sbr.rel target = $region3
  $region8: #{_bernoulli_ste_forward_impl.1} parent=0 // loop_exit
    _

</llo_original>
